<compile_context>
chip_gen: v5e
topology: v5e:2x2
jax: 0.10.0
libtpu: 0.0.40
codegen_flags: <defaults>
</compile_context>

<pallas_src>
import functools

import jax
import jax.numpy as jnp
from jax.experimental import pallas as pl
from jax.experimental.pallas import tpu as pltpu

LN_EPS = 1e-5  # PyTorch nn.LayerNorm default eps


def _layernorm(v, w, b):
    mu = jnp.mean(v, axis=-1, keepdims=True)
    var = jnp.mean((v - mu) ** 2, axis=-1, keepdims=True)
    return (v - mu) * jax.lax.rsqrt(var + LN_EPS) * w + b


def _gelu_exact(x):
    # PyTorch nn.GELU default is the exact (erf) form.
    # TODO(synk): switch to tanh-approx GELU (EUP) if the accuracy budget allows.
    return 0.5 * x * (1.0 + jax.lax.erf(x * 0.7071067811865476))


def posemb_sincos_2d(h, w, dim, temperature=10000.0, dtype=jnp.float32):
    assert dim % 4 == 0, "feature dimension must be multiple of 4 for sincos emb"
    y, x = jnp.meshgrid(jnp.arange(h), jnp.arange(w), indexing="ij")
    omega = jnp.arange(dim // 4, dtype=jnp.float32) / (dim // 4 - 1)
    omega = 1.0 / (temperature ** omega)
    y = y.reshape(-1).astype(jnp.float32)[:, None] * omega[None, :]
    x = x.reshape(-1).astype(jnp.float32)[:, None] * omega[None, :]
    pe = jnp.concatenate((jnp.sin(x), jnp.cos(x), jnp.sin(y), jnp.cos(y)), axis=1)
    return pe.astype(dtype)


# ---------------------------------------------------------------------------
# Kernels
# ---------------------------------------------------------------------------
def _embed_kernel(mm_dtype,
                  x_ref, pos_ref, ln0_w, ln0_b, w_pe, b_pe, ln1_w, ln1_b,
                  out_ref):
    """Patch embedding: LN -> Linear -> LN, plus sincos positional embedding."""
    x = _layernorm(x_ref[...], ln0_w[...], ln0_b[...])
    x = jnp.dot(x.astype(mm_dtype), w_pe[...].astype(mm_dtype),
                preferred_element_type=jnp.float32) + b_pe[...]
    x = _layernorm(x, ln1_w[...], ln1_b[...])
    out_ref[...] = x + pos_ref[...]


def _transformer_kernel(Bt, N, heads, dim_head, mm_dtype, scale,
                        x_ref,
                        a_ln_w, a_ln_b, wq, wk, wv, wo,
                        f_ln_w, f_ln_b, w_ff1, b_ff1, w_ff2, b_ff2,
                        out_ref):
    """One (batch-tile, transformer-layer) grid step.

    Activations (Bt*N, dim) are carried across the depth grid axis in the
    revisited output block (written back to HBM only when the batch tile
    changes)."""
    l = pl.program_id(1)
    Mt = Bt * N
    dh = dim_head

    def mm(a, b):
        return jnp.dot(a.astype(mm_dtype), b.astype(mm_dtype),
                       preferred_element_type=jnp.float32)

    def bmm(eq, a, b):
        return jnp.einsum(eq, a.astype(mm_dtype), b.astype(mm_dtype),
                          preferred_element_type=jnp.float32)

    @pl.when(l == 0)
    def _init():
        out_ref[...] = x_ref[...]

    x2 = out_ref[...]                                      # (Mt, dim) f32

    # ------------------------------ attention ------------------------------
    h2 = _layernorm(x2, a_ln_w[0], a_ln_b[0])
    # Fused, lane-dense projections (MXU output lane dim = heads*dim_head).
    q = mm(h2, wq[0]) * scale                              # scale q, not NxN dots
    k = mm(h2, wk[0])
    v = mm(h2, wv[0])

    def split_heads(t):                                    # (Mt, inner) -> (heads*Bt, N, dh)
        return jnp.concatenate(
            [t[:, h * dh:(h + 1) * dh].reshape(Bt, N, dh) for h in range(heads)],
            axis=0)

    q3, k3, v3 = split_heads(q), split_heads(k), split_heads(v)

    # Single attention einsum batched over (heads*Bt); no k.T materialized.
    dots = bmm("bqd,bkd->bqk", q3, k3)                     # (heads*Bt, N, N) f32
    dots = dots - jnp.max(dots, axis=-1, keepdims=True)
    e = jnp.exp(dots)
    attn = e * pl.reciprocal(jnp.sum(e, axis=-1, keepdims=True), approx=True)
    o3 = bmm("bqk,bkd->bqd", attn, v3)                     # (heads*Bt, N, dh)

    # Re-merge heads onto lanes; single output projection with the original
    # (inner, dim) to_out weight layout.
    o = jnp.concatenate(
        [o3[h * Bt:(h + 1) * Bt].reshape(Mt, dh) for h in range(heads)], axis=-1)
    x2 = x2 + mm(o, wo[0])

    # ----------------------------- feed forward ----------------------------
    h2 = _layernorm(x2, f_ln_w[0], f_ln_b[0])
    h2 = mm(h2, w_ff1[0]) + b_ff1[0]
    h2 = _gelu_exact(h2)
    h2 = mm(h2, w_ff2[0]) + b_ff2[0]
    out_ref[...] = x2 + h2


def _head_kernel(mm_dtype, x_ref, fn_w, fn_b, w_head, b_head, out_ref):
    """Final LayerNorm + per-token classifier head (lane-dense padded classes)."""
    xf = _layernorm(x_ref[...], fn_w[...], fn_b[...])
    out_ref[...] = jnp.dot(xf.astype(mm_dtype), w_head[...].astype(mm_dtype),
                           preferred_element_type=jnp.float32) + b_head[...]


# ---------------------------------------------------------------------------
# Wrapper
# ---------------------------------------------------------------------------
def _choose_batch_tile(B, N, target_rows=512):
    """Flatten enough images into the matmul M dimension (target Bt*N >= ~512
    rows) so per-batch-tile weight re-streaming hides under compute.  Sub-full
    row tiles must stay sublane (8) aligned."""
    bt = max(1, min(B, pl.cdiv(target_rows, N)))
    while B % bt:
        bt -= 1
    if bt < B and (bt * N) % 8:
        bt = B
    return bt


def _vmem_limit_bytes():
    """Generation-aware scoped-VMEM budget: ~3/4 of physical VMEM
    (~48 MiB on v7x's 64 MiB, ~96 MiB on v5e/v6e's 128 MiB)."""
    try:
        cap = int(pltpu.get_tpu_info().vmem_capacity_bytes)
        return max(32 * 2**20, min(int(cap * 0.75), 100 * 2**20))
    except Exception:
        return 48 * 2**20      # conservative fallback, safe on every generation


def simple_vit_forward(img, params, *, patch_size, dim, depth, heads, dim_head,
                       num_classes, batch_tile=None, matmul_dtype=jnp.bfloat16):
    """SimpleViT.forward(img) -> per-token logits [B, N, num_classes].

    matmul_dtype is the MXU matmul input dtype (accumulation always f32);
    element-wise math stays f32.  bf16 (default) is MXU-native on all
    generations and halves the streamed-weight DMA bytes / VMEM footprint."""
    (ln0_w, ln0_b, w_pe, b_pe, ln1_w, ln1_b,
     a_ln_w, a_ln_b, w_qkv, w_out,
     f_ln_w, f_ln_b, w_ff1, b_ff1, w_ff2, b_ff2,
     fn_w, fn_b, w_head, b_head) = params

    B, C, H, W = img.shape
    ph = pw = patch_size
    gh, gw = H // ph, W // pw
    N = gh * gw
    patch_dim = C * ph * pw
    inner = heads * dim_head

    # rearrange 'b c (h p1) (w p2) -> b (h w) (p1 p2 c)', rows (B*N, patch_dim)
    x = img.reshape(B, C, gh, ph, gw, pw)
    x = jnp.transpose(x, (0, 2, 4, 3, 5, 1)).reshape(B * N, patch_dim)
    x = x.astype(jnp.float32)

    Bt = batch_tile if batch_tile is not None else _choose_batch_tile(B, N)
    assert B % Bt == 0, "batch_tile must divide batch"
    nb = B // Bt
    Mt = Bt * N

    # Positional embedding pre-tiled to one batch tile of rows (constant block).
    pos_t = jnp.tile(posemb_sincos_2d(gh, gw, dim), (Bt, 1))        # (Mt, dim)

    # Lane-dense per-layer weights (trailing dims inner / dim / mlp_dim), cast
    # to the matmul dtype so streamed bytes & VMEM are halved under bf16.
    wdt = matmul_dtype
    wq = w_qkv[:, :, :inner].astype(wdt)            # (depth, dim, inner)
    wk = w_qkv[:, :, inner:2 * inner].astype(wdt)
    wv = w_qkv[:, :, 2 * inner:].astype(wdt)
    wo = w_out.astype(wdt)                          # (depth, inner, dim)
    w_ff1c = w_ff1.astype(wdt)                      # (depth, dim, mlp_dim)
    w_ff2c = w_ff2.astype(wdt)                      # (depth, mlp_dim, dim)
    w_pe_c = w_pe.astype(wdt)                       # (patch_dim, dim)

    # Lane-dense classifier output: pad classes to a multiple of 128.
    c_pad = pl.cdiv(num_classes, 128) * 128
    w_head_p = (jnp.zeros((dim, c_pad), jnp.float32)
                .at[:, :num_classes].set(w_head).astype(wdt))
    b_head_p = jnp.zeros((1, c_pad), jnp.float32).at[:, :num_classes].set(b_head)

    vmem_limit = _vmem_limit_bytes()
    cp1 = pltpu.CompilerParams(dimension_semantics=("parallel",),
                               vmem_limit_bytes=vmem_limit)
    cp2 = pltpu.CompilerParams(dimension_semantics=("parallel", "arbitrary"),
                               vmem_limit_bytes=vmem_limit)

    def const1(a):      # constant-index operand on the 1-D (batch-tile) grids
        return pl.BlockSpec(a.shape, lambda i, _n=a.ndim: (0,) * _n)

    def layer_spec(a):  # per-layer weight streamed along the depth grid axis
        return pl.BlockSpec((1,) + a.shape[1:],
                            lambda b, l, _n=a.ndim - 1: (l,) + (0,) * _n)

    # ---- 1) patch embedding -------------------------------------------------
    x_emb = pl.pallas_call(
        functools.partial(_embed_kernel, matmul_dtype),
        out_shape=jax.ShapeDtypeStruct((B * N, dim), jnp.float32),
        grid=(nb,),
        in_specs=[pl.BlockSpec((Mt, patch_dim), lambda i: (i, 0)),
                  const1(pos_t), const1(ln0_w), const1(ln0_b),
                  const1(w_pe_c), const1(b_pe), const1(ln1_w), const1(ln1_b)],
        out_specs=pl.BlockSpec((Mt, dim), lambda i: (i, 0)),
        compiler_params=cp1,
    )(x, pos_t, ln0_w, ln0_b, w_pe_c, b_pe, ln1_w, ln1_b)

    # ---- 2) transformer layers: grid (batch tiles, depth) -------------------
    layer_ws = [a_ln_w, a_ln_b, wq, wk, wv, wo,
                f_ln_w, f_ln_b, w_ff1c, b_ff1, w_ff2c, b_ff2]
    x_tr = pl.pallas_call(
        functools.partial(_transformer_kernel, Bt, N, heads, dim_head,
                          matmul_dtype, dim_head ** -0.5),
        out_shape=jax.ShapeDtypeStruct((B * N, dim), jnp.float32),
        grid=(nb, depth),
        in_specs=[pl.BlockSpec((Mt, dim), lambda b, l: (b, 0))]
                 + [layer_spec(a) for a in layer_ws],
        out_specs=pl.BlockSpec((Mt, dim), lambda b, l: (b, 0)),
        compiler_params=cp2,
    )(x_emb, *layer_ws)

    # ---- 3) final LayerNorm + classifier head --------------------------------
    logits = pl.pallas_call(
        functools.partial(_head_kernel, matmul_dtype),
        out_shape=jax.ShapeDtypeStruct((B * N, c_pad), jnp.float32),
        grid=(nb,),
        in_specs=[pl.BlockSpec((Mt, dim), lambda i: (i, 0)),
                  const1(fn_w), const1(fn_b), const1(w_head_p), const1(b_head_p)],
        out_specs=pl.BlockSpec((Mt, c_pad), lambda i: (i, 0)),
        compiler_params=cp1,
    )(x_tr, fn_w, fn_b, w_head_p, b_head_p)

    return logits[:, :num_classes].reshape(B, N, num_classes)


# ---------------------------------------------------------------------------
# Deterministic synthetic parameters (shapes follow SimpleViT.__init__)
# ---------------------------------------------------------------------------
def init_params(key, *, patch_dim, dim, depth, heads, dim_head, mlp_dim, num_classes):
    inner = heads * dim_head
    ks = jax.random.split(key, 10)

    def w(k, shape, scale=0.05):
        return (scale * jax.random.normal(k, shape)).astype(jnp.float32)

    return [
        jnp.ones((1, patch_dim), jnp.float32),    # patch-embed LN0 weight
        jnp.zeros((1, patch_dim), jnp.float32),   # patch-embed LN0 bias
        w(ks[0], (patch_dim, dim)),               # patch-embed Linear weight
        w(ks[1], (1, dim)),                       # patch-embed Linear bias
        jnp.ones((1, dim), jnp.float32),          # patch-embed LN1 weight
        jnp.zeros((1, dim), jnp.float32),         # patch-embed LN1 bias
        jnp.ones((depth, 1, dim), jnp.float32),   # attn LN weight (stacked)
        jnp.zeros((depth, 1, dim), jnp.float32),  # attn LN bias
        w(ks[2], (depth, dim, 3 * inner)),        # to_qkv (no bias)
        w(ks[3], (depth, inner, dim)),            # to_out (no bias)
        jnp.ones((depth, 1, dim), jnp.float32),   # FF LN weight
        jnp.zeros((depth, 1, dim), jnp.float32),  # FF LN bias
        w(ks[4], (depth, dim, mlp_dim)),          # FF Linear1 weight
        w(ks[5], (depth, 1, mlp_dim)),            # FF Linear1 bias
        w(ks[6], (depth, mlp_dim, dim)),          # FF Linear2 weight
        w(ks[7], (depth, 1, dim)),                # FF Linear2 bias
        jnp.ones((1, dim), jnp.float32),          # final LN weight
        jnp.zeros((1, dim), jnp.float32),         # final LN bias
        w(ks[8], (dim, num_classes)),             # linear_head weight
        w(ks[9], (1, num_classes)),               # linear_head bias
    ]


# ---------------------------------------------------------------------------
# Pure-JAX f32 reference (mirrors PyTorch semantics)
# ---------------------------------------------------------------------------
def reference_forward(img, params, *, patch_size, dim, depth, heads, dim_head,
                      num_classes):
    (ln0_w, ln0_b, w_pe, b_pe, ln1_w, ln1_b,
     a_ln_w, a_ln_b, w_qkv, w_out,
     f_ln_w, f_ln_b, w_ff1, b_ff1, w_ff2, b_ff2,
     fn_w, fn_b, w_head, b_head) = params

    B, C, H, W = img.shape
    ph = pw = patch_size
    gh, gw = H // ph, W // pw
    N = gh * gw
    patch_dim = C * ph * pw
    inner = heads * dim_head
    scale = dim_head ** (-0.5)

    x = img.reshape(B, C, gh, ph, gw, pw)
    x = jnp.transpose(x, (0, 2, 4, 3, 5, 1)).reshape(B, N, patch_dim).astype(jnp.float32)

    x = _layernorm(x, ln0_w, ln0_b)
    x = x @ w_pe + b_pe
    x = _layernorm(x, ln1_w, ln1_b)
    x = x + posemb_sincos_2d(gh, gw, dim)[None]

    for l in range(depth):
        h = _layernorm(x, a_ln_w[l], a_ln_b[l])
        qkv = h @ w_qkv[l]
        q, k, v = jnp.split(qkv, 3, axis=-1)
        sh = lambda t: t.reshape(B, N, heads, dim_head).transpose(0, 2, 1, 3)
        q, k, v = sh(q), sh(k), sh(v)
        dots = jnp.einsum("bhnd,bhmd->bhnm", q, k) * scale
        attn = jax.nn.softmax(dots, axis=-1)
        o = jnp.einsum("bhnm,bhmd->bhnd", attn, v)
        o = o.transpose(0, 2, 1, 3).reshape(B, N, inner)
        x = x + o @ w_out[l]

        h = _layernorm(x, f_ln_w[l], f_ln_b[l])
        h = _gelu_exact(h @ w_ff1[l] + b_ff1[l])
        h = h @ w_ff2[l] + b_ff2[l]
        x = x + h

    x = _layernorm(x, fn_w, fn_b)
    return x @ w_head + b_head


if __name__ == "__main__":
    # Small SimpleViT config.
    B, C = 4, 3
    image_size, patch_size = 16, 4
    dim, depth, heads, dim_head = 32, 2, 2, 8
    mlp_dim, num_classes = 64, 10
    patch_dim = C * patch_size * patch_size

    key = jax.random.PRNGKey(0)
    k_img, k_par = jax.random.split(key)
    img = jax.random.normal(k_img, (B, C, image_size, image_size), dtype=jnp.float32)
    params = init_params(k_par, patch_dim=patch_dim, dim=dim, depth=depth,
                         heads=heads, dim_head=dim_head, mlp_dim=mlp_dim,
                         num_classes=num_classes)

    cfg = dict(patch_size=patch_size, dim=dim, depth=depth, heads=heads,
               dim_head=dim_head, num_classes=num_classes)

    ref = jax.block_until_ready(reference_forward(img, params, **cfg))
    N = (image_size // patch_size) ** 2

    # f32-matmul path: tight check of the kernel semantics against the reference.
    out_f32 = jax.block_until_ready(
        simple_vit_forward(img, params, matmul_dtype=jnp.float32, **cfg))
    assert out_f32.shape == (B, N, num_classes)
    err_f32 = float(jnp.max(jnp.abs(out_f32 - ref)))
    assert jnp.allclose(out_f32, ref, atol=2e-3, rtol=2e-3), err_f32

    # Default bf16-MXU path (performance configuration): looser tolerance.
    out_bf16 = jax.block_until_ready(simple_vit_forward(img, params, **cfg))
    assert out_bf16.shape == (B, N, num_classes)
    err_bf16 = float(jnp.max(jnp.abs(out_bf16 - ref)))
    assert jnp.allclose(out_bf16, ref, atol=3e-2, rtol=3e-2), err_bf16

    print("KERNEL_OK")
</pallas_src>

<mosaic_0001>
module attributes {stable_mosaic.version = 11 : i64} {
  func.func @_embed_kernel(%arg0: i32, %arg1: memref<64x48xf32, #tpu.memory_space<vmem>>, %arg2: memref<64x32xf32, #tpu.memory_space<vmem>>, %arg3: memref<1x48xf32, #tpu.memory_space<vmem>>, %arg4: memref<1x48xf32, #tpu.memory_space<vmem>>, %arg5: memref<48x32xf32, #tpu.memory_space<vmem>>, %arg6: memref<1x32xf32, #tpu.memory_space<vmem>>, %arg7: memref<1x32xf32, #tpu.memory_space<vmem>>, %arg8: memref<1x32xf32, #tpu.memory_space<vmem>>, %arg9: memref<64x32xf32, #tpu.memory_space<vmem>>) attributes {dimension_semantics = [#tpu.dimension_semantics<parallel>], iteration_bounds = array<i64: 1>, scalar_prefetch = 0 : i64, scratch_operands = 0 : i64, tpu.core_type = #tpu.core_type<tc>, window_params = [{transform_indices = @transform_0, window_bounds = array<i64: 64, 48>}, {pipeline_mode = #tpu.pipeline_mode<synchronous>, transform_indices = @transform_1, window_bounds = array<i64: 64, 32>}, {pipeline_mode = #tpu.pipeline_mode<synchronous>, transform_indices = @transform_2, window_bounds = array<i64: 1, 48>}, {pipeline_mode = #tpu.pipeline_mode<synchronous>, transform_indices = @transform_3, window_bounds = array<i64: 1, 48>}, {pipeline_mode = #tpu.pipeline_mode<synchronous>, transform_indices = @transform_4, window_bounds = array<i64: 48, 32>}, {pipeline_mode = #tpu.pipeline_mode<synchronous>, transform_indices = @transform_5, window_bounds = array<i64: 1, 32>}, {pipeline_mode = #tpu.pipeline_mode<synchronous>, transform_indices = @transform_6, window_bounds = array<i64: 1, 32>}, {pipeline_mode = #tpu.pipeline_mode<synchronous>, transform_indices = @transform_7, window_bounds = array<i64: 1, 32>}, {transform_indices = @transform_8, window_bounds = array<i64: 64, 32>}]} {
    %c0 = arith.constant 0 : index
    %c0_0 = arith.constant 0 : index
    %0 = vector.load %arg1[%c0, %c0_0] : memref<64x48xf32, #tpu.memory_space<vmem>>, vector<64x48xf32>
    %c0_1 = arith.constant 0 : index
    %c0_2 = arith.constant 0 : index
    %1 = vector.load %arg3[%c0_1, %c0_2] : memref<1x48xf32, #tpu.memory_space<vmem>>, vector<1x48xf32>
    %c0_3 = arith.constant 0 : index
    %c0_4 = arith.constant 0 : index
    %2 = vector.load %arg4[%c0_3, %c0_4] : memref<1x48xf32, #tpu.memory_space<vmem>>, vector<1x48xf32>
    %cst = arith.constant dense<0.000000e+00> : vector<64xf32>
    %3 = vector.multi_reduction <add>, %0, %cst [1] : vector<64x48xf32> to vector<64xf32>
    %4 = vector.shape_cast %3 : vector<64xf32> to vector<64x1xf32>
    %cst_5 = arith.constant 4.800000e+01 : f32
    %5 = vector.broadcast %cst_5 : f32 to vector<64x1xf32>
    %6 = arith.divf %4, %5 : vector<64x1xf32>
    %7 = vector.broadcast %6 : vector<64x1xf32> to vector<64x48xf32>
    %8 = arith.subf %0, %7 : vector<64x48xf32>
    %9 = arith.mulf %8, %8 : vector<64x48xf32>
    %cst_6 = arith.constant dense<0.000000e+00> : vector<64xf32>
    %10 = vector.multi_reduction <add>, %9, %cst_6 [1] : vector<64x48xf32> to vector<64xf32>
    %11 = vector.shape_cast %10 : vector<64xf32> to vector<64x1xf32>
    %cst_7 = arith.constant 4.800000e+01 : f32
    %12 = vector.broadcast %cst_7 : f32 to vector<64x1xf32>
    %13 = arith.divf %11, %12 : vector<64x1xf32>
    %14 = vector.broadcast %6 : vector<64x1xf32> to vector<64x48xf32>
    %15 = arith.subf %0, %14 : vector<64x48xf32>
    %cst_8 = arith.constant 9.99999974E-6 : f32
    %16 = vector.broadcast %cst_8 : f32 to vector<64x1xf32>
    %17 = arith.addf %13, %16 : vector<64x1xf32>
    %18 = math.rsqrt %17 : vector<64x1xf32>
    %19 = vector.broadcast %18 : vector<64x1xf32> to vector<64x48xf32>
    %20 = arith.mulf %15, %19 : vector<64x48xf32>
    %21 = vector.broadcast %1 : vector<1x48xf32> to vector<64x48xf32>
    %22 = arith.mulf %20, %21 : vector<64x48xf32>
    %23 = vector.broadcast %2 : vector<1x48xf32> to vector<64x48xf32>
    %24 = arith.addf %22, %23 : vector<64x48xf32>
    %c0_9 = arith.constant 0 : index
    %c0_10 = arith.constant 0 : index
    %25 = vector.load %arg5[%c0_9, %c0_10] : memref<48x32xf32, #tpu.memory_space<vmem>>, vector<48x32xf32>
    %cst_11 = arith.constant dense<0.000000e+00> : vector<64x32xf32>
    %26 = tpu.matmul %24, %25, %cst_11 {dimension_numbers = #tpu.dot_dimension_numbers<[1], [0], [0], [1], [0, 0, 1, 1], [], []>} : vector<64x48xf32>, vector<48x32xf32>, vector<64x32xf32> -> vector<64x32xf32>
    %c0_12 = arith.constant 0 : index
    %c0_13 = arith.constant 0 : index
    %27 = vector.load %arg6[%c0_12, %c0_13] : memref<1x32xf32, #tpu.memory_space<vmem>>, vector<1x32xf32>
    %28 = vector.broadcast %27 : vector<1x32xf32> to vector<64x32xf32>
    %29 = arith.addf %26, %28 : vector<64x32xf32>
    %c0_14 = arith.constant 0 : index
    %c0_15 = arith.constant 0 : index
    %30 = vector.load %arg7[%c0_14, %c0_15] : memref<1x32xf32, #tpu.memory_space<vmem>>, vector<1x32xf32>
    %c0_16 = arith.constant 0 : index
    %c0_17 = arith.constant 0 : index
    %31 = vector.load %arg8[%c0_16, %c0_17] : memref<1x32xf32, #tpu.memory_space<vmem>>, vector<1x32xf32>
    %cst_18 = arith.constant dense<0.000000e+00> : vector<64xf32>
    %32 = vector.multi_reduction <add>, %29, %cst_18 [1] : vector<64x32xf32> to vector<64xf32>
    %33 = vector.shape_cast %32 : vector<64xf32> to vector<64x1xf32>
    %cst_19 = arith.constant 3.200000e+01 : f32
    %34 = vector.broadcast %cst_19 : f32 to vector<64x1xf32>
    %35 = arith.divf %33, %34 : vector<64x1xf32>
    %36 = vector.broadcast %35 : vector<64x1xf32> to vector<64x32xf32>
    %37 = arith.subf %29, %36 : vector<64x32xf32>
    %38 = arith.mulf %37, %37 : vector<64x32xf32>
    %cst_20 = arith.constant dense<0.000000e+00> : vector<64xf32>
    %39 = vector.multi_reduction <add>, %38, %cst_20 [1] : vector<64x32xf32> to vector<64xf32>
    %40 = vector.shape_cast %39 : vector<64xf32> to vector<64x1xf32>
    %cst_21 = arith.constant 3.200000e+01 : f32
    %41 = vector.broadcast %cst_21 : f32 to vector<64x1xf32>
    %42 = arith.divf %40, %41 : vector<64x1xf32>
    %43 = vector.broadcast %35 : vector<64x1xf32> to vector<64x32xf32>
    %44 = arith.subf %29, %43 : vector<64x32xf32>
    %cst_22 = arith.constant 9.99999974E-6 : f32
    %45 = vector.broadcast %cst_22 : f32 to vector<64x1xf32>
    %46 = arith.addf %42, %45 : vector<64x1xf32>
    %47 = math.rsqrt %46 : vector<64x1xf32>
    %48 = vector.broadcast %47 : vector<64x1xf32> to vector<64x32xf32>
    %49 = arith.mulf %44, %48 : vector<64x32xf32>
    %50 = vector.broadcast %30 : vector<1x32xf32> to vector<64x32xf32>
    %51 = arith.mulf %49, %50 : vector<64x32xf32>
    %52 = vector.broadcast %31 : vector<1x32xf32> to vector<64x32xf32>
    %53 = arith.addf %51, %52 : vector<64x32xf32>
    %c0_23 = arith.constant 0 : index
    %c0_24 = arith.constant 0 : index
    %54 = vector.load %arg2[%c0_23, %c0_24] : memref<64x32xf32, #tpu.memory_space<vmem>>, vector<64x32xf32>
    %55 = arith.addf %53, %54 : vector<64x32xf32>
    %c0_25 = arith.constant 0 : index
    %c0_26 = arith.constant 0 : index
    %56 = vector.load %arg9[%c0_25, %c0_26] : memref<64x32xf32, #tpu.memory_space<vmem>>, vector<64x32xf32>
    tpu.vector_store %arg9[%c0_25, %c0_26], %55 {strides = array<i32>} : memref<64x32xf32, #tpu.memory_space<vmem>>, vector<64x32xf32>,
    return
  }
  func.func @transform_0(%arg0: i32) -> (i32, i32) {
    %c0_i32 = arith.constant 0 : i32
    %c0_i32_0 = arith.constant 0 : i32
    return %arg0, %c0_i32 : i32, i32
  }
  func.func @transform_1(%arg0: i32) -> (i32, i32) {
    %c0_i32 = arith.constant 0 : i32
    %c0_i32_0 = arith.constant 0 : i32
    %c0_i32_1 = arith.constant 0 : i32
    return %c0_i32, %c0_i32_0 : i32, i32
  }
  func.func @transform_2(%arg0: i32) -> (i32, i32) {
    %c0_i32 = arith.constant 0 : i32
    %c0_i32_0 = arith.constant 0 : i32
    %c0_i32_1 = arith.constant 0 : i32
    return %c0_i32, %c0_i32_0 : i32, i32
  }
  func.func @transform_3(%arg0: i32) -> (i32, i32) {
    %c0_i32 = arith.constant 0 : i32
    %c0_i32_0 = arith.constant 0 : i32
    %c0_i32_1 = arith.constant 0 : i32
    return %c0_i32, %c0_i32_0 : i32, i32
  }
  func.func @transform_4(%arg0: i32) -> (i32, i32) {
    %c0_i32 = arith.constant 0 : i32
    %c0_i32_0 = arith.constant 0 : i32
    %c0_i32_1 = arith.constant 0 : i32
    return %c0_i32, %c0_i32_0 : i32, i32
  }
  func.func @transform_5(%arg0: i32) -> (i32, i32) {
    %c0_i32 = arith.constant 0 : i32
    %c0_i32_0 = arith.constant 0 : i32
    %c0_i32_1 = arith.constant 0 : i32
    return %c0_i32, %c0_i32_0 : i32, i32
  }
  func.func @transform_6(%arg0: i32) -> (i32, i32) {
    %c0_i32 = arith.constant 0 : i32
    %c0_i32_0 = arith.constant 0 : i32
    %c0_i32_1 = arith.constant 0 : i32
    return %c0_i32, %c0_i32_0 : i32, i32
  }
  func.func @transform_7(%arg0: i32) -> (i32, i32) {
    %c0_i32 = arith.constant 0 : i32
    %c0_i32_0 = arith.constant 0 : i32
    %c0_i32_1 = arith.constant 0 : i32
    return %c0_i32, %c0_i32_0 : i32, i32
  }
  func.func @transform_8(%arg0: i32) -> (i32, i32) {
    %c0_i32 = arith.constant 0 : i32
    %c0_i32_0 = arith.constant 0 : i32
    return %arg0, %c0_i32 : i32, i32
  }
}

</mosaic_0001>

<llo_original>
// kernel: tpu_custom_call.1
$region0: #{tpu_custom_call.1}
  #allocation0 [shape = 'u32[]', space=smem, size = 0x4, offset = 0x4, fixed_abs, tag = 'smem constant byte address 0x4 - core index']
  #allocation1 [shape = 'u32[72,128]{1,0:T(1,128)}', space=vmem, size = 0x9000, scoped, tag = 'internal scratch']
  %s0 = inlined_call_operand.vmem [shape: f32[64,48], index: 0, kind: input, shape index: {}]
  %s1 = inlined_call_operand.vmem [shape: f32[64,32], index: 1, kind: input, shape index: {}]
  %s2 = inlined_call_operand.vmem [shape: f32[1,48], index: 2, kind: input, shape index: {}]
  %s3 = inlined_call_operand.vmem [shape: f32[1,48], index: 3, kind: input, shape index: {}]
  %s4 = inlined_call_operand.vmem [shape: f32[48,32], index: 4, kind: input, shape index: {}]
  %s5 = inlined_call_operand.vmem [shape: f32[1,32], index: 5, kind: input, shape index: {}]
  %s6 = inlined_call_operand.vmem [shape: f32[1,32], index: 6, kind: input, shape index: {}]
  %s7 = inlined_call_operand.vmem [shape: f32[1,32], index: 7, kind: input, shape index: {}]
  %s8 = inlined_call_operand.vmem [shape: f32[64,32], index: 8, kind: output, shape index: {}]
  %s9 = sld [smem:[#allocation0]]
  $region42: #{tpu_custom_call.1} parent=0
    _
  %s11 = ssub.s32 1, %s9
  %s12 = scalar_select 0, %s11, %s9
  // Predicated region
  $region2: #{tpu_custom_call.1} parent=0 // pred_check
    _
  $region3: #{tpu_custom_call.1} parent=0 // pred_check_branch
    %14 = sbr.rel (0) target = $region5
  $region4: #{tpu_custom_call.1} parent=0 // pred_region
    _
  $region5: #{tpu_custom_call.1} parent=0 // pred_fallthru
    _
  // Predicated region
  $region6: #{tpu_custom_call.1} parent=0 // pred_check
    _
  $region7: #{tpu_custom_call.1} parent=0 // pred_check_branch
    %16 = sbr.rel (0) target = $region9
  $region8: #{tpu_custom_call.1} parent=0 // pred_region
    _
  $region9: #{tpu_custom_call.1} parent=0 // pred_fallthru
    _
  // Predicated region
  $region10: #{tpu_custom_call.1} parent=0 // pred_check
    _
  $region11: #{tpu_custom_call.1} parent=0 // pred_check_branch
    %18 = sbr.rel (0) target = $region13
  $region12: #{tpu_custom_call.1} parent=0 // pred_region
    _
  $region13: #{tpu_custom_call.1} parent=0 // pred_fallthru
    _
  // Predicated region
  $region14: #{tpu_custom_call.1} parent=0 // pred_check
    _
  $region15: #{tpu_custom_call.1} parent=0 // pred_check_branch
    %20 = sbr.rel (0) target = $region17
  $region16: #{tpu_custom_call.1} parent=0 // pred_region
    _
  $region17: #{tpu_custom_call.1} parent=0 // pred_fallthru
    _
  // Predicated region
  $region18: #{tpu_custom_call.1} parent=0 // pred_check
    _
  $region19: #{tpu_custom_call.1} parent=0 // pred_check_branch
    %22 = sbr.rel (0) target = $region21
  $region20: #{tpu_custom_call.1} parent=0 // pred_region
    _
  $region21: #{tpu_custom_call.1} parent=0 // pred_fallthru
    _
  // Predicated region
  $region22: #{tpu_custom_call.1} parent=0 // pred_check
    _
  $region23: #{tpu_custom_call.1} parent=0 // pred_check_branch
    %24 = sbr.rel (0) target = $region25
  $region24: #{tpu_custom_call.1} parent=0 // pred_region
    _
  $region25: #{tpu_custom_call.1} parent=0 // pred_fallthru
    _
  // Predicated region
  $region26: #{tpu_custom_call.1} parent=0 // pred_check
    _
  $region27: #{tpu_custom_call.1} parent=0 // pred_check_branch
    %26 = sbr.rel (0) target = $region29
  $region28: #{tpu_custom_call.1} parent=0 // pred_region
    _
  $region29: #{tpu_custom_call.1} parent=0 // pred_fallthru
    _
  // Predicated region
  $region30: #{tpu_custom_call.1} parent=0 // pred_check
    _
  $region31: #{tpu_custom_call.1} parent=0 // pred_check_branch
    %28 = sbr.rel (0) target = $region33
  $region32: #{tpu_custom_call.1} parent=0 // pred_region
    _
  $region33: #{tpu_custom_call.1} parent=0 // pred_fallthru
    _
  %v29 = vld [vmem:[%s0] sm:$0xff]
  %v30 = vld [vmem:[%s0 + $0x8] sm:$0xff]
  %v31 = vld [vmem:[%s0 + $0x10] sm:$0xff]
  %v32 = vld [vmem:[%s0 + $0x18] sm:$0xff]
  %v33 = vld [vmem:[%s0 + $0x20] sm:$0xff]
  %v34 = vld [vmem:[%s0 + $0x28] sm:$0xff]
  %v35 = vld [vmem:[%s0 + $0x30] sm:$0xff]
  %v36 = vld [vmem:[%s0 + $0x38] sm:$0xff]
  %v37 = vld [vmem:[%s2] sm:$0x1]
  %v38 = vld [vmem:[%s3] sm:$0x1]
  %vm39 = vcmask 392192
  %v40 = vsel %vm39, %v29, 0.0
  %41 = vadd.xlane.f32.xlu0 %v40
  %v42 = vpop.xlane.xlu0 %41
  %v43 = vsel %vm39, %v30, 0.0
  %44 = vadd.xlane.f32.xlu0 %v43
  %v45 = vpop.xlane.xlu0 %44
  %v46 = vsel %vm39, %v31, 0.0
  %47 = vadd.xlane.f32.xlu0 %v46
  %v48 = vpop.xlane.xlu0 %47
  %v49 = vsel %vm39, %v32, 0.0
  %50 = vadd.xlane.f32.xlu0 %v49
  %v51 = vpop.xlane.xlu0 %50
  %v52 = vsel %vm39, %v33, 0.0
  %53 = vadd.xlane.f32.xlu0 %v52
  %v54 = vpop.xlane.xlu0 %53
  %v55 = vsel %vm39, %v34, 0.0
  %56 = vadd.xlane.f32.xlu0 %v55
  %v57 = vpop.xlane.xlu0 %56
  %v58 = vsel %vm39, %v35, 0.0
  %59 = vadd.xlane.f32.xlu0 %v58
  %v60 = vpop.xlane.xlu0 %59
  %v61 = vsel %vm39, %v36, 0.0
  %62 = vadd.xlane.f32.xlu0 %v61
  %v63 = vpop.xlane.xlu0 %62
  %v64 = vrcp.pop 48.0
  %v65 = vmul.f32 48.0, %v64
  %v66 = vsub.f32 1.0, %v65
  %v67 = vmul.f32 %v64, %v66
  %v68 = vadd.f32 %v64, %v67
  %vm69 = vweird.f32 %v64
  %v70 = vsel %vm69, %v64, %v68
  %v71 = vmul.f32 %v42, %v70
  %v72 = vmul.f32 %v45, %v70
  %v73 = vmul.f32 %v48, %v70
  %v74 = vmul.f32 %v51, %v70
  %v75 = vmul.f32 %v54, %v70
  %v76 = vmul.f32 %v57, %v70
  %v77 = vmul.f32 %v60, %v70
  %v78 = vmul.f32 %v63, %v70
  %v79 = vsub.f32 %v29, %v71
  %v80 = vsub.f32 %v30, %v72
  %v81 = vsub.f32 %v31, %v73
  %v82 = vsub.f32 %v32, %v74
  %v83 = vsub.f32 %v33, %v75
  %v84 = vsub.f32 %v34, %v76
  %v85 = vsub.f32 %v35, %v77
  %v86 = vsub.f32 %v36, %v78
  %v87 = vmul.f32 %v79, %v79
  %v88 = vmul.f32 %v80, %v80
  %v89 = vmul.f32 %v81, %v81
  %v90 = vmul.f32 %v82, %v82
  %v91 = vmul.f32 %v83, %v83
  %v92 = vmul.f32 %v84, %v84
  %v93 = vmul.f32 %v85, %v85
  %v94 = vmul.f32 %v86, %v86
  %v95 = vsel %vm39, %v87, 0.0
  %96 = vadd.xlane.f32.xlu0 %v95
  %v97 = vpop.xlane.xlu0 %96
  %v98 = vsel %vm39, %v88, 0.0
  %99 = vadd.xlane.f32.xlu0 %v98
  %v100 = vpop.xlane.xlu0 %99
  %v101 = vsel %vm39, %v89, 0.0
  %102 = vadd.xlane.f32.xlu0 %v101
  %v103 = vpop.xlane.xlu0 %102
  %v104 = vsel %vm39, %v90, 0.0
  %105 = vadd.xlane.f32.xlu0 %v104
  %v106 = vpop.xlane.xlu0 %105
  %v107 = vsel %vm39, %v91, 0.0
  %108 = vadd.xlane.f32.xlu0 %v107
  %v109 = vpop.xlane.xlu0 %108
  %v110 = vsel %vm39, %v92, 0.0
  %111 = vadd.xlane.f32.xlu0 %v110
  %v112 = vpop.xlane.xlu0 %111
  %v113 = vsel %vm39, %v93, 0.0
  %114 = vadd.xlane.f32.xlu0 %v113
  %v115 = vpop.xlane.xlu0 %114
  %v116 = vsel %vm39, %v94, 0.0
  %117 = vadd.xlane.f32.xlu0 %v116
  %v118 = vpop.xlane.xlu0 %117
  %v119 = vmul.f32 %v97, %v70
  %v120 = vmul.f32 %v100, %v70
  %v121 = vmul.f32 %v103, %v70
  %v122 = vmul.f32 %v106, %v70
  %v123 = vmul.f32 %v109, %v70
  %v124 = vmul.f32 %v112, %v70
  %v125 = vmul.f32 %v115, %v70
  %v126 = vmul.f32 %v118, %v70
  %v127 = vadd.f32 %v119, 1e-05
  %v128 = vadd.f32 %v120, 1e-05
  %v129 = vadd.f32 %v121, 1e-05
  %v130 = vadd.f32 %v122, 1e-05
  %v131 = vadd.f32 %v123, 1e-05
  %v132 = vadd.f32 %v124, 1e-05
  %v133 = vadd.f32 %v125, 1e-05
  %v134 = vadd.f32 %v126, 1e-05
  %v135 = vrsqrt.pop %v127
  %v136 = vmul.f32 %v135, %v127
  %v137 = vmul.f32 %v136, %v135
  %v138 = vmul.f32 0.5, %v137
  %v139 = vsub.f32 1.5, %v138
  %v140 = vmul.f32 %v135, %v139
  %vm141 = vweird.f32 %v127
  %vm142 = vweird.f32 %v135
  %vm143 = vmor %vm141, %vm142
  %v144 = vsel %vm143, %v135, %v140
  %v145 = vrsqrt.pop %v128
  %v146 = vmul.f32 %v145, %v128
  %v147 = vmul.f32 %v146, %v145
  %v148 = vmul.f32 0.5, %v147
  %v149 = vsub.f32 1.5, %v148
  %v150 = vmul.f32 %v145, %v149
  %vm151 = vweird.f32 %v128
  %vm152 = vweird.f32 %v145
  %vm153 = vmor %vm151, %vm152
  %v154 = vsel %vm153, %v145, %v150
  %v155 = vrsqrt.pop %v129
  %v156 = vmul.f32 %v155, %v129
  %v157 = vmul.f32 %v156, %v155
  %v158 = vmul.f32 0.5, %v157
  %v159 = vsub.f32 1.5, %v158
  %v160 = vmul.f32 %v155, %v159
  %vm161 = vweird.f32 %v129
  %vm162 = vweird.f32 %v155
  %vm163 = vmor %vm161, %vm162
  %v164 = vsel %vm163, %v155, %v160
  %v165 = vrsqrt.pop %v130
  %v166 = vmul.f32 %v165, %v130
  %v167 = vmul.f32 %v166, %v165
  %v168 = vmul.f32 0.5, %v167
  %v169 = vsub.f32 1.5, %v168
  %v170 = vmul.f32 %v165, %v169
  %vm171 = vweird.f32 %v130
  %vm172 = vweird.f32 %v165
  %vm173 = vmor %vm171, %vm172
  %v174 = vsel %vm173, %v165, %v170
  %v175 = vrsqrt.pop %v131
  %v176 = vmul.f32 %v175, %v131
  %v177 = vmul.f32 %v176, %v175
  %v178 = vmul.f32 0.5, %v177
  %v179 = vsub.f32 1.5, %v178
  %v180 = vmul.f32 %v175, %v179
  %vm181 = vweird.f32 %v131
  %vm182 = vweird.f32 %v175
  %vm183 = vmor %vm181, %vm182
  %v184 = vsel %vm183, %v175, %v180
  %v185 = vrsqrt.pop %v132
  %v186 = vmul.f32 %v185, %v132
  %v187 = vmul.f32 %v186, %v185
  %v188 = vmul.f32 0.5, %v187
  %v189 = vsub.f32 1.5, %v188
  %v190 = vmul.f32 %v185, %v189
  %vm191 = vweird.f32 %v132
  %vm192 = vweird.f32 %v185
  %vm193 = vmor %vm191, %vm192
  %v194 = vsel %vm193, %v185, %v190
  %v195 = vrsqrt.pop %v133
  %v196 = vmul.f32 %v195, %v133
  %v197 = vmul.f32 %v196, %v195
  %v198 = vmul.f32 0.5, %v197
  %v199 = vsub.f32 1.5, %v198
  %v200 = vmul.f32 %v195, %v199
  %vm201 = vweird.f32 %v133
  %vm202 = vweird.f32 %v195
  %vm203 = vmor %vm201, %vm202
  %v204 = vsel %vm203, %v195, %v200
  %v205 = vrsqrt.pop %v134
  %v206 = vmul.f32 %v205, %v134
  %v207 = vmul.f32 %v206, %v205
  %v208 = vmul.f32 0.5, %v207
  %v209 = vsub.f32 1.5, %v208
  %v210 = vmul.f32 %v205, %v209
  %vm211 = vweird.f32 %v134
  %vm212 = vweird.f32 %v205
  %vm213 = vmor %vm211, %vm212
  %v214 = vsel %vm213, %v205, %v210
  %v215 = vmul.f32 %v79, %v144
  %v216 = vmul.f32 %v80, %v154
  %v217 = vmul.f32 %v81, %v164
  %v218 = vmul.f32 %v82, %v174
  %v219 = vmul.f32 %v83, %v184
  %v220 = vmul.f32 %v84, %v194
  %v221 = vmul.f32 %v85, %v204
  %v222 = vmul.f32 %v86, %v214
  %v224 = vperm.slane %v37, 0
  %v226 = vmul.f32 %v215, %v224
  %v227 = vmul.f32 %v216, %v224
  %v228 = vmul.f32 %v217, %v224
  %v229 = vmul.f32 %v218, %v224
  %v230 = vmul.f32 %v219, %v224
  %v231 = vmul.f32 %v220, %v224
  %v232 = vmul.f32 %v221, %v224
  %v233 = vmul.f32 %v222, %v224
  %v235 = vperm.slane %v38, 0
  %v237 = vadd.f32 %v226, %v235
  %v238 = vadd.f32 %v227, %v235
  %v239 = vadd.f32 %v228, %v235
  %v240 = vadd.f32 %v229, %v235
  %v241 = vadd.f32 %v230, %v235
  %v242 = vadd.f32 %v231, %v235
  %v243 = vadd.f32 %v232, %v235
  %v244 = vadd.f32 %v233, %v235
  %v245 = vld [vmem:[%s4] sm:$0xff]
  %v246 = vld [vmem:[%s4 + $0x8] sm:$0xff]
  %v247 = vld [vmem:[%s4 + $0x10] sm:$0xff]
  %v248 = vld [vmem:[%s4 + $0x18] sm:$0xff]
  %v249 = vld [vmem:[%s4 + $0x20] sm:$0xff]
  %v250 = vld [vmem:[%s4 + $0x28] sm:$0xff]
  %v251 = vld [vmem:[%s5] sm:$0x1]
  %v253 = vperm.slane %v251, 0
  %v256 = vsel %vm39, %v237, 0
  %v259 = vsel %vm39, %v238, 0
  %v262 = vsel %vm39, %v239, 0
  %v265 = vsel %vm39, %v240, 0
  %v268 = vsel %vm39, %v241, 0
  %v271 = vsel %vm39, %v242, 0
  %v274 = vsel %vm39, %v243, 0
  %v277 = vsel %vm39, %v244, 0
  %279 = vmatpush.msra.mxu0 0.0
  %280 = vmatpush.msra.mxu0 0.0
  %281 = vmatpush.msra.mxu0 0.0
  %282 = vmatpush.msra.mxu0 0.0
  %283 = vmatpush.msra.mxu0 0.0
  %284 = vmatpush.msra.mxu0 0.0
  %285 = vmatpush.msra.mxu0 0.0
  %286 = vmatpush.msra.mxu0 0.0
  %287 = vmatpush.msra.mxu0 0.0
  %288 = vmatpush.msra.mxu0 0.0
  %289 = vmatpush.msra.mxu0 %v250
  %290 = vmatpush.msra.mxu0 %v249
  %291 = vmatpush.msra.mxu0 %v248
  %292 = vmatpush.msra.mxu0 %v247
  %293 = vmatpush.msra.mxu0 %v246
  %294 = vmatpush.msra.mxu0 %v245
  %295 = vmatmul.f32.gmra.mxu0 %v256
  %v296 = vpop.f32.mrf.mxu0
  %v297 = vadd.f32 %v253, %v296
  %298 = vmatmul.f32.gmra.mxu0 %v259
  %v299 = vpop.f32.mrf.mxu0
  %v300 = vadd.f32 %v253, %v299
  %301 = vmatmul.f32.gmra.mxu0 %v262
  %v302 = vpop.f32.mrf.mxu0
  %v303 = vadd.f32 %v253, %v302
  %304 = vmatmul.f32.gmra.mxu0 %v265
  %v305 = vpop.f32.mrf.mxu0
  %v306 = vadd.f32 %v253, %v305
  %307 = vmatmul.f32.gmra.mxu0 %v268
  %v308 = vpop.f32.mrf.mxu0
  %v309 = vadd.f32 %v253, %v308
  %310 = vmatmul.f32.gmra.mxu0 %v271
  %v311 = vpop.f32.mrf.mxu0
  %v312 = vadd.f32 %v253, %v311
  %313 = vmatmul.f32.gmra.mxu0 %v274
  %v314 = vpop.f32.mrf.mxu0
  %v315 = vadd.f32 %v253, %v314
  %316 = vmatmul.f32.gmra.mxu0 %v277
  %v317 = vpop.f32.mrf.mxu0
  %v318 = vadd.f32 %v253, %v317
  %319 = vdwg.mxu0
  %v320 = vld [vmem:[%s6] sm:$0x1]
  %v321 = vld [vmem:[%s7] sm:$0x1]
  %vm322 = vcmask 261120
  %v323 = vsel %vm322, %v297, 0.0
  %324 = vadd.xlane.f32.xlu0 %v323
  %v325 = vpop.xlane.xlu0 %324
  %v326 = vsel %vm322, %v300, 0.0
  %327 = vadd.xlane.f32.xlu0 %v326
  %v328 = vpop.xlane.xlu0 %327
  %v329 = vsel %vm322, %v303, 0.0
  %330 = vadd.xlane.f32.xlu0 %v329
  %v331 = vpop.xlane.xlu0 %330
  %v332 = vsel %vm322, %v306, 0.0
  %333 = vadd.xlane.f32.xlu0 %v332
  %v334 = vpop.xlane.xlu0 %333
  %v335 = vsel %vm322, %v309, 0.0
  %336 = vadd.xlane.f32.xlu0 %v335
  %v337 = vpop.xlane.xlu0 %336
  %v338 = vsel %vm322, %v312, 0.0
  %339 = vadd.xlane.f32.xlu0 %v338
  %v340 = vpop.xlane.xlu0 %339
  %v341 = vsel %vm322, %v315, 0.0
  %342 = vadd.xlane.f32.xlu0 %v341
  %v343 = vpop.xlane.xlu0 %342
  %v344 = vsel %vm322, %v318, 0.0
  %345 = vadd.xlane.f32.xlu0 %v344
  %v346 = vpop.xlane.xlu0 %345
  %v347 = vrcp.pop 32.0
  %v348 = vmul.f32 32.0, %v347
  %v349 = vsub.f32 1.0, %v348
  %v350 = vmul.f32 %v347, %v349
  %v351 = vadd.f32 %v347, %v350
  %vm352 = vweird.f32 %v347
  %v353 = vsel %vm352, %v347, %v351
  %v354 = vmul.f32 %v325, %v353
  %v355 = vmul.f32 %v328, %v353
  %v356 = vmul.f32 %v331, %v353
  %v357 = vmul.f32 %v334, %v353
  %v358 = vmul.f32 %v337, %v353
  %v359 = vmul.f32 %v340, %v353
  %v360 = vmul.f32 %v343, %v353
  %v361 = vmul.f32 %v346, %v353
  %v362 = vsub.f32 %v297, %v354
  %v363 = vsub.f32 %v300, %v355
  %v364 = vsub.f32 %v303, %v356
  %v365 = vsub.f32 %v306, %v357
  %v366 = vsub.f32 %v309, %v358
  %v367 = vsub.f32 %v312, %v359
  %v368 = vsub.f32 %v315, %v360
  %v369 = vsub.f32 %v318, %v361
  %v370 = vmul.f32 %v362, %v362
  %v371 = vmul.f32 %v363, %v363
  %v372 = vmul.f32 %v364, %v364
  %v373 = vmul.f32 %v365, %v365
  %v374 = vmul.f32 %v366, %v366
  %v375 = vmul.f32 %v367, %v367
  %v376 = vmul.f32 %v368, %v368
  %v377 = vmul.f32 %v369, %v369
  %v378 = vsel %vm322, %v370, 0.0
  %379 = vadd.xlane.f32.xlu0 %v378
  %v380 = vpop.xlane.xlu0 %379
  %v381 = vsel %vm322, %v371, 0.0
  %382 = vadd.xlane.f32.xlu0 %v381
  %v383 = vpop.xlane.xlu0 %382
  %v384 = vsel %vm322, %v372, 0.0
  %385 = vadd.xlane.f32.xlu0 %v384
  %v386 = vpop.xlane.xlu0 %385
  %v387 = vsel %vm322, %v373, 0.0
  %388 = vadd.xlane.f32.xlu0 %v387
  %v389 = vpop.xlane.xlu0 %388
  %v390 = vsel %vm322, %v374, 0.0
  %391 = vadd.xlane.f32.xlu0 %v390
  %v392 = vpop.xlane.xlu0 %391
  %v393 = vsel %vm322, %v375, 0.0
  %394 = vadd.xlane.f32.xlu0 %v393
  %v395 = vpop.xlane.xlu0 %394
  %v396 = vsel %vm322, %v376, 0.0
  %397 = vadd.xlane.f32.xlu0 %v396
  %v398 = vpop.xlane.xlu0 %397
  %v399 = vsel %vm322, %v377, 0.0
  %400 = vadd.xlane.f32.xlu0 %v399
  %v401 = vpop.xlane.xlu0 %400
  %v402 = vmul.f32 %v380, %v353
  %v403 = vmul.f32 %v383, %v353
  %v404 = vmul.f32 %v386, %v353
  %v405 = vmul.f32 %v389, %v353
  %v406 = vmul.f32 %v392, %v353
  %v407 = vmul.f32 %v395, %v353
  %v408 = vmul.f32 %v398, %v353
  %v409 = vmul.f32 %v401, %v353
  %v410 = vadd.f32 %v402, 1e-05
  %v411 = vadd.f32 %v403, 1e-05
  %v412 = vadd.f32 %v404, 1e-05
  %v413 = vadd.f32 %v405, 1e-05
  %v414 = vadd.f32 %v406, 1e-05
  %v415 = vadd.f32 %v407, 1e-05
  %v416 = vadd.f32 %v408, 1e-05
  %v417 = vadd.f32 %v409, 1e-05
  %v418 = vrsqrt.pop %v410
  %v419 = vmul.f32 %v418, %v410
  %v420 = vmul.f32 %v419, %v418
  %v421 = vmul.f32 0.5, %v420
  %v422 = vsub.f32 1.5, %v421
  %v423 = vmul.f32 %v418, %v422
  %vm424 = vweird.f32 %v410
  %vm425 = vweird.f32 %v418
  %vm426 = vmor %vm424, %vm425
  %v427 = vsel %vm426, %v418, %v423
  %v428 = vrsqrt.pop %v411
  %v429 = vmul.f32 %v428, %v411
  %v430 = vmul.f32 %v429, %v428
  %v431 = vmul.f32 0.5, %v430
  %v432 = vsub.f32 1.5, %v431
  %v433 = vmul.f32 %v428, %v432
  %vm434 = vweird.f32 %v411
  %vm435 = vweird.f32 %v428
  %vm436 = vmor %vm434, %vm435
  %v437 = vsel %vm436, %v428, %v433
  %v438 = vrsqrt.pop %v412
  %v439 = vmul.f32 %v438, %v412
  %v440 = vmul.f32 %v439, %v438
  %v441 = vmul.f32 0.5, %v440
  %v442 = vsub.f32 1.5, %v441
  %v443 = vmul.f32 %v438, %v442
  %vm444 = vweird.f32 %v412
  %vm445 = vweird.f32 %v438
  %vm446 = vmor %vm444, %vm445
  %v447 = vsel %vm446, %v438, %v443
  %v448 = vrsqrt.pop %v413
  %v449 = vmul.f32 %v448, %v413
  %v450 = vmul.f32 %v449, %v448
  %v451 = vmul.f32 0.5, %v450
  %v452 = vsub.f32 1.5, %v451
  %v453 = vmul.f32 %v448, %v452
  %vm454 = vweird.f32 %v413
  %vm455 = vweird.f32 %v448
  %vm456 = vmor %vm454, %vm455
  %v457 = vsel %vm456, %v448, %v453
  %v458 = vrsqrt.pop %v414
  %v459 = vmul.f32 %v458, %v414
  %v460 = vmul.f32 %v459, %v458
  %v461 = vmul.f32 0.5, %v460
  %v462 = vsub.f32 1.5, %v461
  %v463 = vmul.f32 %v458, %v462
  %vm464 = vweird.f32 %v414
  %vm465 = vweird.f32 %v458
  %vm466 = vmor %vm464, %vm465
  %v467 = vsel %vm466, %v458, %v463
  %v468 = vrsqrt.pop %v415
  %v469 = vmul.f32 %v468, %v415
  %v470 = vmul.f32 %v469, %v468
  %v471 = vmul.f32 0.5, %v470
  %v472 = vsub.f32 1.5, %v471
  %v473 = vmul.f32 %v468, %v472
  %vm474 = vweird.f32 %v415
  %vm475 = vweird.f32 %v468
  %vm476 = vmor %vm474, %vm475
  %v477 = vsel %vm476, %v468, %v473
  %v478 = vrsqrt.pop %v416
  %v479 = vmul.f32 %v478, %v416
  %v480 = vmul.f32 %v479, %v478
  %v481 = vmul.f32 0.5, %v480
  %v482 = vsub.f32 1.5, %v481
  %v483 = vmul.f32 %v478, %v482
  %vm484 = vweird.f32 %v416
  %vm485 = vweird.f32 %v478
  %vm486 = vmor %vm484, %vm485
  %v487 = vsel %vm486, %v478, %v483
  %v488 = vrsqrt.pop %v417
  %v489 = vmul.f32 %v488, %v417
  %v490 = vmul.f32 %v489, %v488
  %v491 = vmul.f32 0.5, %v490
  %v492 = vsub.f32 1.5, %v491
  %v493 = vmul.f32 %v488, %v492
  %vm494 = vweird.f32 %v417
  %vm495 = vweird.f32 %v488
  %vm496 = vmor %vm494, %vm495
  %v497 = vsel %vm496, %v488, %v493
  %v498 = vmul.f32 %v362, %v427
  %v499 = vmul.f32 %v363, %v437
  %v500 = vmul.f32 %v364, %v447
  %v501 = vmul.f32 %v365, %v457
  %v502 = vmul.f32 %v366, %v467
  %v503 = vmul.f32 %v367, %v477
  %v504 = vmul.f32 %v368, %v487
  %v505 = vmul.f32 %v369, %v497
  %v507 = vperm.slane %v320, 0
  %v509 = vmul.f32 %v498, %v507
  %v510 = vmul.f32 %v499, %v507
  %v511 = vmul.f32 %v500, %v507
  %v512 = vmul.f32 %v501, %v507
  %v513 = vmul.f32 %v502, %v507
  %v514 = vmul.f32 %v503, %v507
  %v515 = vmul.f32 %v504, %v507
  %v516 = vmul.f32 %v505, %v507
  %v518 = vperm.slane %v321, 0
  %v520 = vadd.f32 %v509, %v518
  %v521 = vadd.f32 %v510, %v518
  %v522 = vadd.f32 %v511, %v518
  %v523 = vadd.f32 %v512, %v518
  %v524 = vadd.f32 %v513, %v518
  %v525 = vadd.f32 %v514, %v518
  %v526 = vadd.f32 %v515, %v518
  %v527 = vadd.f32 %v516, %v518
  %v528 = vld [vmem:[%s1] sm:$0xff]
  %v529 = vld [vmem:[%s1 + $0x8] sm:$0xff]
  %v530 = vld [vmem:[%s1 + $0x10] sm:$0xff]
  %v531 = vld [vmem:[%s1 + $0x18] sm:$0xff]
  %v532 = vld [vmem:[%s1 + $0x20] sm:$0xff]
  %v533 = vld [vmem:[%s1 + $0x28] sm:$0xff]
  %v534 = vld [vmem:[%s1 + $0x30] sm:$0xff]
  %v535 = vld [vmem:[%s1 + $0x38] sm:$0xff]
  %v536 = vadd.f32 %v520, %v528
  %v537 = vadd.f32 %v521, %v529
  %v538 = vadd.f32 %v522, %v530
  %v539 = vadd.f32 %v523, %v531
  %v540 = vadd.f32 %v524, %v532
  %v541 = vadd.f32 %v525, %v533
  %v542 = vadd.f32 %v526, %v534
  %v543 = vadd.f32 %v527, %v535
  %544 = vst.msk [vmem:[%s8] sm:$0xff] %vm322, %v536
  %545 = vst.msk [vmem:[%s8 + $0x8] sm:$0xff] %vm322, %v537
  %546 = vst.msk [vmem:[%s8 + $0x10] sm:$0xff] %vm322, %v538
  %547 = vst.msk [vmem:[%s8 + $0x18] sm:$0xff] %vm322, %v539
  %548 = vst.msk [vmem:[%s8 + $0x20] sm:$0xff] %vm322, %v540
  %549 = vst.msk [vmem:[%s8 + $0x28] sm:$0xff] %vm322, %v541
  %550 = vst.msk [vmem:[%s8 + $0x30] sm:$0xff] %vm322, %v542
  %551 = vst.msk [vmem:[%s8 + $0x38] sm:$0xff] %vm322, %v543
  // Predicated region
  $region34: #{tpu_custom_call.1} parent=0 // pred_check
    _
  $region35: #{tpu_custom_call.1} parent=0 // pred_check_branch
    %553 = sbr.rel (0) target = $region37
  $region36: #{tpu_custom_call.1} parent=0 // pred_region
    _
  $region37: #{tpu_custom_call.1} parent=0 // pred_fallthru
    _
  // Predicated region
  $region38: #{tpu_custom_call.1} parent=0 // pred_check
    _
  $region39: #{tpu_custom_call.1} parent=0 // pred_check_branch
    %555 = sbr.rel (0) target = $region41
  $region40: #{tpu_custom_call.1} parent=0 // pred_region
    _
  $region41: #{tpu_custom_call.1} parent=0 // pred_fallthru
    _

</llo_original>
